<compile_context>
chip_gen: v6e
topology: v6e:2x2x1
jax: 0.10.0
libtpu: 0.0.40
codegen_flags: <defaults>
</compile_context>

<pallas_src>
import math
import jax
import jax.numpy as jnp
from jax.experimental import pallas as pl
from jax.experimental.pallas import tpu as pltpu


def _round_up(x, m):
    return ((x + m - 1) // m) * m


def _round_down(x, m):
    return (x // m) * m


def _linear_kernel(x_ref, w_ref, o_ref):
    # x_ref: (tb, 1)  block in VMEM
    # w_ref: (1, tn)  block in VMEM
    # o_ref: (tb, tn) block in VMEM
    # K=1 contraction == outer product; broadcast multiply on the VPU.
    # Kernel is 100% output-writeback bound -> compute is free filler.
    o_ref[...] = (x_ref[...] * w_ref[...]).astype(o_ref.dtype)


_MAX_TILE_BYTES = 8 << 20        # 8 MiB output tile -> ~16 MiB double-buffered
_FAST_PATH_ELEMS = 64 * 1024     # below this, XLA's fused broadcast-mul wins


def linear_forward(x, weight, *, out_dtype=None, use_pallas=None):
    """Forward of the Linear module: out = x @ weight.T

    Args:
      x:         (batch, 1) float32
      weight:    (n_units, 1) float32  (PyTorch nn.Linear weight layout)
      out_dtype: optional narrower output dtype (e.g. bf16) to halve write traffic
      use_pallas: None = auto (fast path for tiny shapes), True/False to force
    Returns:
      (batch, n_units) array
    """
    b, k = x.shape
    n, k2 = weight.shape
    assert k == 1 and k2 == 1
    out_dtype = x.dtype if out_dtype is None else jnp.dtype(out_dtype)

    # (n, 1) -> (1, n) as a free reshape (no transpose HLO / copy).
    w_row = jnp.reshape(weight, (1, n))

    # Small-shape fast path: a (1,1)-grid pallas_call is pure fixed cost there.
    if use_pallas is None:
        use_pallas = (b * n) > _FAST_PATH_ELEMS
    if not use_pallas:
        return (x * w_row).astype(out_dtype)

    itemsize = jnp.dtype(out_dtype).itemsize
    max_tile_elems = max(_MAX_TILE_BYTES // itemsize, 8 * 128)

    # ---- tile selection -----------------------------------------------------
    # Prefer full-width tiles (tn = n): contiguous output DMA, W fetched once.
    if n <= max_tile_elems // 8:
        tn = n                                    # == full array dim (allowed)
        tb_cap = max(max_tile_elems // max(n, 1), 8)
        if b <= tb_cap:
            tb = b                                # == full array dim (allowed)
        else:
            tb = max(8, _round_down(tb_cap, 8))   # multiple of 8; edge masked
    else:
        # n too wide even for 8 rows at the tile budget -> 2-D tiling.
        tb = b if b < 8 else 8
        tn = max(128, _round_down(max_tile_elems // max(tb, 1), 128))

    grid_b = pl.cdiv(b, tb)
    grid_n = pl.cdiv(n, tn)

    # v7x megacore: make sure a non-trivial problem has >= 2 parallel steps.
    if grid_b * grid_n == 1 and b >= 16 and (b * n * itemsize) > (1 << 20):
        tb = max(8, _round_up(pl.cdiv(b, 2), 8))
        grid_b = pl.cdiv(b, tb)

    grid = (grid_b, grid_n)

    # Double-buffered output tile + tiny input blocks + slack; always well
    # under v7x's 64 MiB physical VMEM, and explicitly above the v5e 16 MiB
    # scoped default when tiles are large.
    tile_bytes = tb * tn * itemsize
    vmem_limit = min(2 * tile_bytes + (16 << 20), 48 << 20)

    cost = pl.CostEstimate(
        flops=b * n,
        transcendentals=0,
        bytes_accessed=b * n * itemsize + 4 * (b + n),
    )

    out = pl.pallas_call(
        _linear_kernel,
        out_shape=jax.ShapeDtypeStruct((b, n), out_dtype),
        grid_spec=pltpu.PrefetchScalarGridSpec(
            num_scalar_prefetch=0,
            grid=grid,
            in_specs=[
                pl.BlockSpec((tb, 1), lambda i, j: (i, 0)),
                pl.BlockSpec((1, tn), lambda i, j: (0, j)),
            ],
            out_specs=pl.BlockSpec((tb, tn), lambda i, j: (i, j)),
        ),
        compiler_params=pltpu.CompilerParams(
            # Both axes independent -> shard across v7x's 2 TensorCores;
            # harmless on single-TC v5e/v6e.
            dimension_semantics=("parallel", "parallel"),
            vmem_limit_bytes=vmem_limit,
        ),
        cost_estimate=cost,
    )(x, w_row)

    return out


def init_linear_params(key, n_units, init_scale=1.0):
    # Matches: layer.weight.data.normal_(0.0, init_scale * sqrt(2/(1+n_units)))
    std = init_scale * math.sqrt(2.0 / (1 + n_units))
    weight = std * jax.random.normal(key, (n_units, 1), dtype=jnp.float32)
    return weight


if __name__ == "__main__":
    key = jax.random.PRNGKey(0)
    k_w, k_x = jax.random.split(key)

    n_units = 32
    batch = 8

    weight = init_linear_params(k_w, n_units, init_scale=1.0)
    x = jax.random.normal(k_x, (batch, 1), dtype=jnp.float32)

    # Force the Pallas path so the kernel itself is exercised at demo shapes.
    out = linear_forward(x, weight, use_pallas=True)
    out = jax.block_until_ready(out)

    ref = x @ weight.T
    assert out.shape == (batch, n_units)
    assert jnp.allclose(out, ref, atol=1e-5, rtol=1e-5)

    # Auto path (tiny shape -> XLA fast path) must match as well.
    out_auto = jax.block_until_ready(linear_forward(x, weight))
    assert jnp.allclose(out_auto, ref, atol=1e-5, rtol=1e-5)

    print("KERNEL_OK")
</pallas_src>

<mosaic_0001>
module attributes {stable_mosaic.version = 11 : i64} {
  func.func @_linear_kernel(%arg0: i32, %arg1: i32, %arg2: memref<8x1xf32, #tpu.memory_space<vmem>>, %arg3: memref<1x32xf32, #tpu.memory_space<vmem>>, %arg4: memref<8x32xf32, #tpu.memory_space<vmem>>) attributes {dimension_semantics = [#tpu.dimension_semantics<parallel>, #tpu.dimension_semantics<parallel>], iteration_bounds = array<i64: 1, 1>, scalar_prefetch = 0 : i64, scratch_operands = 0 : i64, tpu.core_type = #tpu.core_type<tc>, window_params = [{transform_indices = @transform_0, window_bounds = array<i64: 8, 1>}, {transform_indices = @transform_1, window_bounds = array<i64: 1, 32>}, {transform_indices = @transform_2, window_bounds = array<i64: 8, 32>}]} {
    %c0 = arith.constant 0 : index
    %c0_0 = arith.constant 0 : index
    %0 = vector.load %arg2[%c0, %c0_0] : memref<8x1xf32, #tpu.memory_space<vmem>>, vector<8x1xf32>
    %c0_1 = arith.constant 0 : index
    %c0_2 = arith.constant 0 : index
    %1 = vector.load %arg3[%c0_1, %c0_2] : memref<1x32xf32, #tpu.memory_space<vmem>>, vector<1x32xf32>
    %2 = vector.broadcast %0 : vector<8x1xf32> to vector<8x32xf32>
    %3 = vector.broadcast %1 : vector<1x32xf32> to vector<8x32xf32>
    %4 = arith.mulf %2, %3 : vector<8x32xf32>
    %c0_3 = arith.constant 0 : index
    %c0_4 = arith.constant 0 : index
    %5 = vector.load %arg4[%c0_3, %c0_4] : memref<8x32xf32, #tpu.memory_space<vmem>>, vector<8x32xf32>
    tpu.vector_store %arg4[%c0_3, %c0_4], %4 {strides = array<i32>} : memref<8x32xf32, #tpu.memory_space<vmem>>, vector<8x32xf32>,
    return
  }
  func.func @transform_0(%arg0: i32, %arg1: i32) -> (i32, i32) {
    %c0_i32 = arith.constant 0 : i32
    %c0_i32_0 = arith.constant 0 : i32
    return %arg0, %c0_i32 : i32, i32
  }
  func.func @transform_1(%arg0: i32, %arg1: i32) -> (i32, i32) {
    %c0_i32 = arith.constant 0 : i32
    %c0_i32_0 = arith.constant 0 : i32
    return %c0_i32, %arg1 : i32, i32
  }
  func.func @transform_2(%arg0: i32, %arg1: i32) -> (i32, i32) {
    %c0_i32 = arith.constant 0 : i32
    return %arg0, %arg1 : i32, i32
  }
}

</mosaic_0001>

<llo_original>
// kernel: tpu_custom_call.1
$region0: #{tpu_custom_call.1}
  #allocation0 [shape = 'u32[]', space=smem, size = 0x4, offset = 0x4, fixed_abs, tag = 'smem constant byte address 0x4 - core index']
  #allocation1 [shape = 'u32[144,128]{1,0:T(1,128)}', space=vmem, size = 0x12000, scoped, tag = 'internal scratch']
  %s0 = inlined_call_operand.vmem [shape: f32[8,1], index: 0, kind: input, shape index: {}]
  %s1 = inlined_call_operand.vmem [shape: f32[1,32], index: 1, kind: input, shape index: {}]
  %s2 = inlined_call_operand.hbm [shape: f32[8,32], index: 2, kind: output, shape index: {}]
  %s3 = sld [smem:[#allocation0]]
  $region18: #{tpu_custom_call.1} parent=0
    _
  %s5 = ssub.s32 1, %s3
  %s6 = scalar_select 0, %s5, %s3
  $region1: #{tpu_custom_call.1} parent=0
    #allocation2 [shape = 'u8[4096]{0}', space=vmem, size = 0x1000, scoped, tag = 'output window, operand 0, single buffered']
    #allocation3 [shape = 's32[1]{0}', space=sflag, size = 0x4, scoped, tag = 'scoped memory for tpu_custom_call.1']
    %7 = vsyncpa [#allocation3], 0
    // Predicated region
    $region2: #{tpu_custom_call.1} parent=1 // pred_check
      _
    $region3: #{tpu_custom_call.1} parent=1 // pred_check_branch
      %9 = sbr.rel (0) target = $region5
    $region4: #{tpu_custom_call.1} parent=1 // pred_region
      _
    $region5: #{tpu_custom_call.1} parent=1 // pred_fallthru
      _
    // Predicated region
    $region6: #{tpu_custom_call.1} parent=1 // pred_check
      _
    $region7: #{tpu_custom_call.1} parent=1 // pred_check_branch
      %11 = sbr.rel (0) target = $region9
    $region8: #{tpu_custom_call.1} parent=1 // pred_region
      _
    $region9: #{tpu_custom_call.1} parent=1 // pred_fallthru
      _
    %v12 = vld [vmem:[%s0] sm:$0xff]
    %v13 = vld [vmem:[%s1] sm:$0x1]
    %15 = vset.pattern.permute.xlu0 0
    %16 = vperm.xlu0 %15, %v12
    %v17 = vpop.permute.xlu0 %16
    %v20 = vlaneseq
    %v21 = vshrl.u32 %v20, 7
    %v22 = vsub.s32 0, %v21
    %v23 = vrot.slane %v13, %v22
    %v25 = vmul.f32 %v17, %v23
    %vm26 = vcmask 261120
    %27 = vst.msk [vmem:[#allocation2] sm:$0xff] %vm26, %v25
    // Predicated region
    $region10: #{tpu_custom_call.1} parent=1 // pred_check
      _
    $region11: #{tpu_custom_call.1} parent=1 // pred_check_branch
      %29 = sbr.rel (0) target = $region13
    $region12: #{tpu_custom_call.1} parent=1 // pred_region
      %s31 = ssub.s32 128, 128
      %32 = vsyncadd [#allocation3], %s31
      %s34 = sshll.u32 [#allocation2], 4
      %s35 = int_to_ptr.vmem [resolvable:$true] %s34
      %37 = dma.vmem_to_hbm [thread:$0]  %s35, 128, %s2, [#allocation3]
    $region13: #{tpu_custom_call.1} parent=1 // pred_fallthru
      _
    // Predicated region
    $region14: #{tpu_custom_call.1} parent=1 // pred_check
      _
    $region15: #{tpu_custom_call.1} parent=1 // pred_check_branch
      %39 = sbr.rel (0) target = $region17
    $region16: #{tpu_custom_call.1} parent=1 // pred_region
      %40 = dma.done [#allocation3], 128
    $region17: #{tpu_custom_call.1} parent=1 // pred_fallthru
      _
    %41 = vsyncpa [#allocation3], 1

</llo_original>
